<compile_context>
chip_gen: v6e
topology: v6e:2x2x1
jax: 0.10.0
libtpu: 0.0.40
codegen_flags: <defaults>
</compile_context>

<pallas_src>
import jax
import jax.numpy as jnp
from jax import lax
from jax.experimental import pallas as pl
from jax.experimental.pallas import tpu as pltpu

NEG_INF = -10000000000.0


# ----------------------------------------------------------------------------
# Plain-JAX bi-LSTM encoders (glue; semantics of nn.LSTM in eval mode).
# TODO(synk): packed-sequence LSTM is emulated here in plain JAX, not in Pallas.
# ----------------------------------------------------------------------------
def _lstm_dir(x, Wih, Whh, bih, bhh):
    B = x.shape[0]
    H = Whh.shape[1]

    def step(carry, xt):
        h, c = carry
        gates = xt @ Wih.T + h @ Whh.T + bih + bhh
        i, f, g, o = jnp.split(gates, 4, axis=-1)
        c = jax.nn.sigmoid(f) * c + jax.nn.sigmoid(i) * jnp.tanh(g)
        h = jax.nn.sigmoid(o) * jnp.tanh(c)
        return (h, c), h

    init = (jnp.zeros((B, H), x.dtype), jnp.zeros((B, H), x.dtype))
    _, hs = lax.scan(step, init, jnp.swapaxes(x, 0, 1))
    return jnp.swapaxes(hs, 0, 1)  # [B, T, H]


def _reverse_within_length(x, lengths):
    T = x.shape[1]
    t = jnp.arange(T)
    idx = lengths[:, None] - 1 - t[None, :]
    idx = jnp.where(idx >= 0, idx, t[None, :])
    return jnp.take_along_axis(x, idx[:, :, None], axis=1)


def bilstm_encode(x, lengths, layer_params):
    """2-layer bidirectional LSTM, batch_first, zero-padded outputs."""
    T = x.shape[1]
    valid = (jnp.arange(T)[None, :] < lengths[:, None]).astype(x.dtype)[:, :, None]
    out = x
    for pf, pb in layer_params:
        hf = _lstm_dir(out, *pf) * valid
        hb = _reverse_within_length(
            _lstm_dir(_reverse_within_length(out, lengths), *pb), lengths) * valid
        out = jnp.concatenate([hf, hb], axis=-1)
    return out  # [B, T, 2*H]


# ----------------------------------------------------------------------------
# Pallas kernel: whole batch in one block.  All matmuls have the batch folded
# into the M dimension; per-example semantics restored via an in-kernel mask
# rebuilt from two tiny id vectors.
# ----------------------------------------------------------------------------
def _scp_kernel(wenc_n_ref, wenc_hs_ref, hdr_b_ref, tok_code_ref, hs_mask_ref,
                WattT_ref, batt_ref, WcT_ref, bc_ref, WhsT_ref, bhs_ref,
                woc_ref, wohs_ref, bout_ref, out_ref):
    f32 = jnp.float32
    wenc_n = wenc_n_ref[...]         # [Mn, hS]   (Mn = bS * mL_n)
    wenc_hs = wenc_hs_ref[...]       # [Mh, hS]   (Mh = bS * mL_hs)

    # W_att over every (batch, token) row at once.
    watt = jnp.dot(wenc_n, WattT_ref[...], preferred_element_type=f32) + batt_ref[...]

    # att[r, c] = <wenc_hs[r], watt[c]>.  Cross-batch and padded-token entries are
    # knocked out below, so the softmax stays per-example.
    att = lax.dot_general(wenc_hs, watt, (((1,), (1,)), ((), ())),
                          preferred_element_type=f32)          # [Mh, Mn]

    # In-kernel block-diagonal + token-length mask: header row r (batch id hdr_b[r])
    # may only attend to token column c whose code equals that batch id (padded
    # tokens carry code -1 and thus never match).  One VPU compare, no mask DMA.
    same_example = hdr_b_ref[...] == tok_code_ref[...]         # [Mh,1]==[1,Mn] -> [Mh,Mn]
    att = jnp.where(same_example, att, NEG_INF)

    m = jnp.max(att, axis=-1, keepdims=True)
    e = jnp.exp(att - m)                                       # masked entries -> exactly 0
    p = e / jnp.sum(e, axis=-1, keepdims=True)                 # [Mh, Mn]

    # Context vectors; off-batch probabilities are exactly 0, so this is correct.
    c_n = jnp.dot(p, wenc_n, preferred_element_type=f32)       # [Mh, hS]

    v_c = jnp.dot(c_n, WcT_ref[...], preferred_element_type=f32) + bc_ref[...]
    v_hs = jnp.dot(wenc_hs, WhsT_ref[...], preferred_element_type=f32) + bhs_ref[...]

    # sc_out = Linear(2*hS, 1) o Tanh.  tanh(cat(a,b)) @ W^T
    #   = tanh(a) @ W[:, :hS]^T + tanh(b) @ W[:, hS:]^T   (no lane-axis concat),
    # and the N=1 matmul is a VPU multiply + XLU lane reduce instead of an MXU push.
    s = (jnp.sum(jnp.tanh(v_c) * woc_ref[...], axis=-1, keepdims=True)
         + jnp.sum(jnp.tanh(v_hs) * wohs_ref[...], axis=-1, keepdims=True)
         + bout_ref[...])                                      # [Mh, 1]

    s = jnp.where(hs_mask_ref[...] > 0, s, NEG_INF)            # mask padded header slots
    out_ref[...] = s.astype(out_ref.dtype)


def scp_pallas(wenc_n, wenc_hs, l_n, l_hs, lin_params):
    bS, mL_n, hS = wenc_n.shape
    mL_hs = wenc_hs.shape[1]
    (W_att, b_att, W_c, b_c, W_hs, b_hs, W_out, b_out) = lin_params

    Mn = bS * mL_n
    Mh = bS * mL_hs

    # Lane-dense 2-D activation slabs (reshape is done in the wrapper, not in-kernel).
    wenc_n_2d = wenc_n.reshape(Mn, hS)
    wenc_hs_2d = wenc_hs.reshape(Mh, hS)

    # Tiny id vectors from which the kernel rebuilds the block-diagonal mask:
    #   hdr_b[r]    = batch id of header row r                     (f32, [Mh, 1])
    #   tok_code[c] = batch id of token col c, or -1 if the token is past l_n of
    #                 its example                                  (f32, [1, Mn])
    #   hs_mask[r]  = 1 iff header row r is a real (non-padded) header.
    l_n_a = jnp.asarray(l_n, jnp.int32)
    l_hs_a = jnp.asarray(l_hs, jnp.int32)
    tok_b = jnp.repeat(jnp.arange(bS), mL_n)                 # batch id of each token col
    tok_t = jnp.tile(jnp.arange(mL_n), bS)                   # token index within example
    hdr_b = jnp.repeat(jnp.arange(bS), mL_hs)                # batch id of each header row
    hdr_i = jnp.tile(jnp.arange(mL_hs), bS)                  # header index within example
    tok_valid = tok_t < l_n_a[tok_b]
    tok_code = jnp.where(tok_valid, tok_b, -1).astype(jnp.float32)[None, :]   # [1, Mn]
    hdr_b_f = hdr_b.astype(jnp.float32)[:, None]                               # [Mh, 1]
    hs_mask = (hdr_i < l_hs_a[hdr_b]).astype(jnp.float32)[:, None]             # [Mh, 1]

    # Weight pre-transposes / splits (parameter-setup glue).
    WattT, WcT, WhsT = W_att.T, W_c.T, W_hs.T
    batt2, bc2, bhs2 = b_att[None], b_c[None], b_hs[None]
    w_out_c = W_out[:, :hS]        # [1, hS]  -> multiplies the W_c(c_n) branch
    w_out_hs = W_out[:, hS:]       # [1, hS]  -> multiplies the W_hs(wenc_hs) branch
    b_out2 = b_out.reshape(1, 1)

    vmem = pltpu.MemorySpace.VMEM
    n_in = 14
    s = pl.pallas_call(
        _scp_kernel,
        out_shape=jax.ShapeDtypeStruct((Mh, 1), jnp.float32),
        in_specs=[pl.BlockSpec(memory_space=vmem) for _ in range(n_in)],
        out_specs=pl.BlockSpec(memory_space=vmem),
    )(wenc_n_2d, wenc_hs_2d, hdr_b_f, tok_code, hs_mask,
      WattT, batt2, WcT, bc2, WhsT, bhs2, w_out_c, w_out_hs, b_out2)

    return s.reshape(bS, mL_hs)


# ----------------------------------------------------------------------------
# Plain-JAX reference of the post-encoder compute (for a correctness check).
# ----------------------------------------------------------------------------
def scp_reference(wenc_n, wenc_hs, l_n, l_hs, lin_params):
    (W_att, b_att, W_c, b_c, W_hs, b_hs, W_out, b_out) = lin_params
    bS, mL_n, hS = wenc_n.shape
    mL_hs = wenc_hs.shape[1]
    att = jnp.einsum("bik,btk->bit", wenc_hs, wenc_n @ W_att.T + b_att)
    mask_n = jnp.arange(mL_n)[None, :] < jnp.asarray(l_n)[:, None]
    att = jnp.where(mask_n[:, None, :], att, NEG_INF)
    p = jax.nn.softmax(att, axis=-1)
    c_n = jnp.einsum("bit,btk->bik", p, wenc_n)
    vec = jnp.concatenate([c_n @ W_c.T + b_c, wenc_hs @ W_hs.T + b_hs], axis=-1)
    s = (jnp.tanh(vec) @ W_out.T + b_out)[..., 0]
    mask_hs = jnp.arange(mL_hs)[None, :] < jnp.asarray(l_hs)[:, None]
    return jnp.where(mask_hs, s, NEG_INF)


# ----------------------------------------------------------------------------
# Deterministic parameter init (PyTorch weight-shape conventions).
# ----------------------------------------------------------------------------
def init_lstm_params(key, input_size, hidden, num_layers):
    params = []
    for layer in range(num_layers):
        in_sz = input_size if layer == 0 else 2 * hidden
        dirs = []
        for _ in range(2):
            key, k0, k1, k2, k3 = jax.random.split(key, 5)
            dirs.append((
                jax.random.normal(k0, (4 * hidden, in_sz), jnp.float32) * 0.1,
                jax.random.normal(k1, (4 * hidden, hidden), jnp.float32) * 0.1,
                jax.random.normal(k2, (4 * hidden,), jnp.float32) * 0.1,
                jax.random.normal(k3, (4 * hidden,), jnp.float32) * 0.1,
            ))
        params.append(tuple(dirs))
    return params, key


def init_linear(key, out_f, in_f):
    key, k0, k1 = jax.random.split(key, 3)
    W = jax.random.normal(k0, (out_f, in_f), jnp.float32) * 0.1
    b = jax.random.normal(k1, (out_f,), jnp.float32) * 0.1
    return (W, b), key


if __name__ == "__main__":
    # Small shapes consistent with the module.
    iS, hS, lS = 32, 32, 2
    bS, mL_n = 2, 8
    l_n = [8, 6]
    l_hs = [3, 2]
    l_hpu = [4, 3, 4, 2, 3]            # one entry per header (sum(l_hs) = 5)
    mL_hs = max(l_hs)
    mL_hpu = max(l_hpu)

    key = jax.random.PRNGKey(0)
    key, kn, kh = jax.random.split(key, 3)
    wemb_n = jax.random.normal(kn, (bS, mL_n, iS), jnp.float32)
    wemb_hpu = jax.random.normal(kh, (sum(l_hs), mL_hpu, iS), jnp.float32)

    # Parameters.
    enc_n_params, key = init_lstm_params(key, iS, hS // 2, lS)
    enc_h_params, key = init_lstm_params(key, iS, hS // 2, lS)
    (W_att, b_att), key = init_linear(key, hS, hS)
    (W_c, b_c), key = init_linear(key, hS, hS)
    (W_hs, b_hs), key = init_linear(key, hS, hS)
    (W_out, b_out), key = init_linear(key, 1, 2 * hS)     # sc_out Linear(2*hS, 1)
    lin_params = (W_att, b_att, W_c, b_c, W_hs, b_hs, W_out, b_out)

    # --- Encoders (plain JAX glue) -----------------------------------------
    wenc_n = bilstm_encode(wemb_n, jnp.array(l_n, jnp.int32), enc_n_params)          # [bS, mL_n, hS]
    wenc_hpu = bilstm_encode(wemb_hpu, jnp.array(l_hpu, jnp.int32), enc_h_params)    # [nH, mL_hpu, hS]
    last_idx = (jnp.array(l_hpu, jnp.int32) - 1)[:, None, None]
    wenc_hpu_last = jnp.take_along_axis(wenc_hpu, last_idx, axis=1)[:, 0]            # [nH, hS]
    wenc_hs = jnp.zeros((bS, mL_hs, hS), jnp.float32)
    st = 0
    for b, l in enumerate(l_hs):
        wenc_hs = wenc_hs.at[b, :l].set(wenc_hpu_last[st:st + l])
        st += l

    # --- Pallas kernel -------------------------------------------------------
    s_sc = scp_pallas(wenc_n, wenc_hs, l_n, l_hs, lin_params)
    s_sc = jax.block_until_ready(s_sc)

    ref = scp_reference(wenc_n, wenc_hs, l_n, l_hs, lin_params)
    assert s_sc.shape == (bS, mL_hs)
    assert jnp.allclose(s_sc, ref, atol=1e-3, rtol=1e-4), "mismatch vs JAX reference"

    print("KERNEL_OK")
</pallas_src>

<mosaic_0001>
module attributes {stable_mosaic.version = 11 : i64} {
  func.func @_scp_kernel(%arg0: memref<16x32xf32, #tpu.memory_space<vmem>>, %arg1: memref<6x32xf32, #tpu.memory_space<vmem>>, %arg2: memref<6x1xf32, #tpu.memory_space<vmem>>, %arg3: memref<1x16xf32, #tpu.memory_space<vmem>>, %arg4: memref<6x1xf32, #tpu.memory_space<vmem>>, %arg5: memref<32x32xf32, #tpu.memory_space<vmem>>, %arg6: memref<1x32xf32, #tpu.memory_space<vmem>>, %arg7: memref<32x32xf32, #tpu.memory_space<vmem>>, %arg8: memref<1x32xf32, #tpu.memory_space<vmem>>, %arg9: memref<32x32xf32, #tpu.memory_space<vmem>>, %arg10: memref<1x32xf32, #tpu.memory_space<vmem>>, %arg11: memref<1x32xf32, #tpu.memory_space<vmem>>, %arg12: memref<1x32xf32, #tpu.memory_space<vmem>>, %arg13: memref<1x1xf32, #tpu.memory_space<vmem>>, %arg14: memref<6x1xf32, #tpu.memory_space<vmem>>) attributes {dimension_semantics = [], scalar_prefetch = 0 : i64, scratch_operands = 0 : i64, tpu.core_type = #tpu.core_type<tc>} {
    %c0 = arith.constant 0 : index
    %c0_0 = arith.constant 0 : index
    %0 = vector.load %arg0[%c0, %c0_0] : memref<16x32xf32, #tpu.memory_space<vmem>>, vector<16x32xf32>
    %c0_1 = arith.constant 0 : index
    %c0_2 = arith.constant 0 : index
    %1 = vector.load %arg1[%c0_1, %c0_2] : memref<6x32xf32, #tpu.memory_space<vmem>>, vector<6x32xf32>
    %c0_3 = arith.constant 0 : index
    %c0_4 = arith.constant 0 : index
    %2 = vector.load %arg5[%c0_3, %c0_4] : memref<32x32xf32, #tpu.memory_space<vmem>>, vector<32x32xf32>
    %cst = arith.constant dense<0.000000e+00> : vector<16x32xf32>
    %3 = tpu.matmul %0, %2, %cst {dimension_numbers = #tpu.dot_dimension_numbers<[1], [0], [0], [1], [0, 0, 1, 1], [], []>} : vector<16x32xf32>, vector<32x32xf32>, vector<16x32xf32> -> vector<16x32xf32>
    %c0_5 = arith.constant 0 : index
    %c0_6 = arith.constant 0 : index
    %4 = vector.load %arg6[%c0_5, %c0_6] : memref<1x32xf32, #tpu.memory_space<vmem>>, vector<1x32xf32>
    %5 = vector.broadcast %4 : vector<1x32xf32> to vector<16x32xf32>
    %6 = arith.addf %3, %5 : vector<16x32xf32>
    %cst_7 = arith.constant dense<0.000000e+00> : vector<6x16xf32>
    %7 = tpu.matmul %1, %6, %cst_7 {dimension_numbers = #tpu.dot_dimension_numbers<[1], [1], [0], [0], [0, 0, 1, 0], [], []>} : vector<6x32xf32>, vector<16x32xf32>, vector<6x16xf32> -> vector<6x16xf32>
    %c0_8 = arith.constant 0 : index
    %c0_9 = arith.constant 0 : index
    %8 = vector.load %arg2[%c0_8, %c0_9] : memref<6x1xf32, #tpu.memory_space<vmem>>, vector<6x1xf32>
    %c0_10 = arith.constant 0 : index
    %c0_11 = arith.constant 0 : index
    %9 = vector.load %arg3[%c0_10, %c0_11] : memref<1x16xf32, #tpu.memory_space<vmem>>, vector<1x16xf32>
    %10 = vector.broadcast %8 : vector<6x1xf32> to vector<6x16xf32>
    %11 = vector.broadcast %9 : vector<1x16xf32> to vector<6x16xf32>
    %12 = arith.cmpf oeq, %10, %11 : vector<6x16xf32>
    %cst_12 = arith.constant -1.000000e+10 : f32
    %13 = vector.broadcast %cst_12 : f32 to vector<6x16xf32>
    %14 = arith.select %12, %7, %13 : vector<6x16xi1>, vector<6x16xf32>
    %cst_13 = arith.constant dense<0xFF800000> : vector<6xf32>
    %15 = vector.multi_reduction <maximumf>, %14, %cst_13 [1] : vector<6x16xf32> to vector<6xf32>
    %16 = vector.shape_cast %15 : vector<6xf32> to vector<6x1xf32>
    %17 = vector.broadcast %16 : vector<6x1xf32> to vector<6x16xf32>
    %18 = arith.subf %14, %17 : vector<6x16xf32>
    %19 = math.exp %18 : vector<6x16xf32>
    %cst_14 = arith.constant dense<0.000000e+00> : vector<6xf32>
    %20 = vector.multi_reduction <add>, %19, %cst_14 [1] : vector<6x16xf32> to vector<6xf32>
    %21 = vector.shape_cast %20 : vector<6xf32> to vector<6x1xf32>
    %22 = vector.broadcast %21 : vector<6x1xf32> to vector<6x16xf32>
    %23 = arith.divf %19, %22 : vector<6x16xf32>
    %cst_15 = arith.constant dense<0.000000e+00> : vector<6x32xf32>
    %24 = tpu.matmul %23, %0, %cst_15 {dimension_numbers = #tpu.dot_dimension_numbers<[1], [0], [0], [1], [0, 0, 1, 1], [], []>} : vector<6x16xf32>, vector<16x32xf32>, vector<6x32xf32> -> vector<6x32xf32>
    %c0_16 = arith.constant 0 : index
    %c0_17 = arith.constant 0 : index
    %25 = vector.load %arg7[%c0_16, %c0_17] : memref<32x32xf32, #tpu.memory_space<vmem>>, vector<32x32xf32>
    %cst_18 = arith.constant dense<0.000000e+00> : vector<6x32xf32>
    %26 = tpu.matmul %24, %25, %cst_18 {dimension_numbers = #tpu.dot_dimension_numbers<[1], [0], [0], [1], [0, 0, 1, 1], [], []>} : vector<6x32xf32>, vector<32x32xf32>, vector<6x32xf32> -> vector<6x32xf32>
    %c0_19 = arith.constant 0 : index
    %c0_20 = arith.constant 0 : index
    %27 = vector.load %arg8[%c0_19, %c0_20] : memref<1x32xf32, #tpu.memory_space<vmem>>, vector<1x32xf32>
    %28 = vector.broadcast %27 : vector<1x32xf32> to vector<6x32xf32>
    %29 = arith.addf %26, %28 : vector<6x32xf32>
    %c0_21 = arith.constant 0 : index
    %c0_22 = arith.constant 0 : index
    %30 = vector.load %arg9[%c0_21, %c0_22] : memref<32x32xf32, #tpu.memory_space<vmem>>, vector<32x32xf32>
    %cst_23 = arith.constant dense<0.000000e+00> : vector<6x32xf32>
    %31 = tpu.matmul %1, %30, %cst_23 {dimension_numbers = #tpu.dot_dimension_numbers<[1], [0], [0], [1], [0, 0, 1, 1], [], []>} : vector<6x32xf32>, vector<32x32xf32>, vector<6x32xf32> -> vector<6x32xf32>
    %c0_24 = arith.constant 0 : index
    %c0_25 = arith.constant 0 : index
    %32 = vector.load %arg10[%c0_24, %c0_25] : memref<1x32xf32, #tpu.memory_space<vmem>>, vector<1x32xf32>
    %33 = vector.broadcast %32 : vector<1x32xf32> to vector<6x32xf32>
    %34 = arith.addf %31, %33 : vector<6x32xf32>
    %35 = math.tanh %29 : vector<6x32xf32>
    %c0_26 = arith.constant 0 : index
    %c0_27 = arith.constant 0 : index
    %36 = vector.load %arg11[%c0_26, %c0_27] : memref<1x32xf32, #tpu.memory_space<vmem>>, vector<1x32xf32>
    %37 = vector.broadcast %36 : vector<1x32xf32> to vector<6x32xf32>
    %38 = arith.mulf %35, %37 : vector<6x32xf32>
    %cst_28 = arith.constant dense<0.000000e+00> : vector<6xf32>
    %39 = vector.multi_reduction <add>, %38, %cst_28 [1] : vector<6x32xf32> to vector<6xf32>
    %40 = vector.shape_cast %39 : vector<6xf32> to vector<6x1xf32>
    %41 = math.tanh %34 : vector<6x32xf32>
    %c0_29 = arith.constant 0 : index
    %c0_30 = arith.constant 0 : index
    %42 = vector.load %arg12[%c0_29, %c0_30] : memref<1x32xf32, #tpu.memory_space<vmem>>, vector<1x32xf32>
    %43 = vector.broadcast %42 : vector<1x32xf32> to vector<6x32xf32>
    %44 = arith.mulf %41, %43 : vector<6x32xf32>
    %cst_31 = arith.constant dense<0.000000e+00> : vector<6xf32>
    %45 = vector.multi_reduction <add>, %44, %cst_31 [1] : vector<6x32xf32> to vector<6xf32>
    %46 = vector.shape_cast %45 : vector<6xf32> to vector<6x1xf32>
    %47 = arith.addf %40, %46 : vector<6x1xf32>
    %c0_32 = arith.constant 0 : index
    %c0_33 = arith.constant 0 : index
    %48 = vector.load %arg13[%c0_32, %c0_33] : memref<1x1xf32, #tpu.memory_space<vmem>>, vector<1x1xf32>
    %49 = vector.broadcast %48 : vector<1x1xf32> to vector<6x1xf32>
    %50 = arith.addf %47, %49 : vector<6x1xf32>
    %c0_34 = arith.constant 0 : index
    %c0_35 = arith.constant 0 : index
    %51 = vector.load %arg4[%c0_34, %c0_35] : memref<6x1xf32, #tpu.memory_space<vmem>>, vector<6x1xf32>
    %cst_36 = arith.constant 0.000000e+00 : f32
    %52 = vector.broadcast %cst_36 : f32 to vector<6x1xf32>
    %53 = arith.cmpf ogt, %51, %52 : vector<6x1xf32>
    %cst_37 = arith.constant -1.000000e+10 : f32
    %54 = vector.broadcast %cst_37 : f32 to vector<6x1xf32>
    %55 = arith.select %53, %50, %54 : vector<6x1xi1>, vector<6x1xf32>
    %c0_38 = arith.constant 0 : index
    %c0_39 = arith.constant 0 : index
    %56 = vector.load %arg14[%c0_38, %c0_39] : memref<6x1xf32, #tpu.memory_space<vmem>>, vector<6x1xf32>
    tpu.vector_store %arg14[%c0_38, %c0_39], %55 {strides = array<i32>} : memref<6x1xf32, #tpu.memory_space<vmem>>, vector<6x1xf32>,
    return
  }
}

</mosaic_0001>

<llo_original>
// kernel: tpu_custom_call.1
$region0: #{tpu_custom_call.1}
  #allocation0 [shape = 'u32[]', space=smem, size = 0x4, offset = 0x4, fixed_abs, tag = 'smem constant byte address 0x4 - core index']
  #allocation1 [shape = 'u32[144,128]{1,0:T(1,128)}', space=vmem, size = 0x12000, scoped, tag = 'internal scratch']
  #allocation2 [shape = 'f32[1,1]{1,0:T(1,128)S(1)}', space=vmem, size = 0x200, scoped, tag = 'scoped memory for tpu_custom_call.1']
  %s0 = inlined_call_operand.hbm [shape: f32[16,32], index: 0, kind: input, shape index: {}]
  %s1 = inlined_call_operand.hbm [shape: f32[6,32], index: 1, kind: input, shape index: {}]
  %s2 = inlined_call_operand.vmem [shape: f32[6,1], index: 2, kind: input, shape index: {}]
  %s3 = inlined_call_operand.hbm [shape: f32[1,16], index: 3, kind: input, shape index: {}]
  %s4 = inlined_call_operand.vmem [shape: f32[6,1], index: 4, kind: input, shape index: {}]
  %s5 = inlined_call_operand.hbm [shape: f32[32,32], index: 5, kind: input, shape index: {}]
  %s6 = inlined_call_operand.hbm [shape: f32[1,32], index: 6, kind: input, shape index: {}]
  %s7 = inlined_call_operand.vmem [shape: f32[32,32], index: 7, kind: input, shape index: {}]
  %s8 = inlined_call_operand.vmem [shape: f32[1,32], index: 8, kind: input, shape index: {}]
  %s9 = inlined_call_operand.hbm [shape: f32[32,32], index: 9, kind: input, shape index: {}]
  %s10 = inlined_call_operand.vmem [shape: f32[1,32], index: 10, kind: input, shape index: {}]
  %s11 = inlined_call_operand.vmem [shape: f32[1,32], index: 11, kind: input, shape index: {}]
  %s12 = inlined_call_operand.vmem [shape: f32[1,32], index: 12, kind: input, shape index: {}]
  %s13 = inlined_call_operand.<no memory space> [shape: f32[1,1], index: 13, kind: input, shape index: {}]
  %s14 = inlined_call_operand.vmem [shape: f32[6,1], index: 14, kind: output, shape index: {}]
  %s15 = sld [smem:[#allocation0]]
  $region90: #{tpu_custom_call.1} parent=0
    _
  %s17 = ssub.s32 1, %s15
  %s18 = scalar_select 0, %s17, %s15
  %v19 = vstv %s13
  %20 = vst [vmem:[#allocation2] sm:$0x1] %v19
  $region1: #{tpu_custom_call.1} parent=0
    #allocation3 [shape = 'u8[8192]{0}', space=vmem, size = 0x2000, scoped, tag = 'input window, operand 0, single buffered']
    #allocation4 [shape = 's32[1]{0}', space=sflag, size = 0x4, scoped, tag = 'scoped memory for tpu_custom_call.1']
    #allocation5 [shape = 'u8[4096]{0}', space=vmem, size = 0x1000, scoped, tag = 'input window, operand 1, single buffered']
    #allocation6 [shape = 's32[1]{0}', space=sflag, size = 0x4, scoped, tag = 'scoped memory for tpu_custom_call.1']
    #allocation7 [shape = 'u8[512]{0}', space=vmem, size = 0x400, scoped, tag = 'input window, operand 3, single buffered']
    #allocation8 [shape = 'u8[16384]{0}', space=vmem, size = 0x4000, scoped, tag = 'input window, operand 5, single buffered']
    #allocation9 [shape = 's32[1]{0}', space=sflag, size = 0x4, scoped, tag = 'scoped memory for tpu_custom_call.1']
    #allocation10 [shape = 'u8[512]{0}', space=vmem, size = 0x400, scoped, tag = 'input window, operand 6, single buffered']
    #allocation11 [shape = 'u8[16384]{0}', space=vmem, size = 0x4000, scoped, tag = 'input window, operand 9, single buffered']
    #allocation12 [shape = 's32[1]{0}', space=sflag, size = 0x4, scoped, tag = 'scoped memory for tpu_custom_call.1']
    %21 = vsyncpa [#allocation4], 0
    %22 = vsyncpa [#allocation6], 0
    %23 = vsyncpa [#allocation9], 0
    %24 = vsyncpa [#allocation12], 0
    // Predicated region
    $region2: #{tpu_custom_call.1} parent=1 // pred_check
      _
    $region3: #{tpu_custom_call.1} parent=1 // pred_check_branch
      %26 = sbr.rel (0) target = $region5
    $region4: #{tpu_custom_call.1} parent=1 // pred_region
      %s28 = ssub.s32 256, 256
      %29 = vsyncadd [#allocation4], %s28
      %s30 = sshll.u32 [#allocation3], 4
      %s31 = int_to_ptr.vmem [resolvable:$true] %s30
      %36 = dma.hbm_to_vmem [thread:$0]  %s0, 256, %s31, [#allocation4], 128, 128, 8
    $region5: #{tpu_custom_call.1} parent=1 // pred_fallthru
      _
    // Predicated region
    $region6: #{tpu_custom_call.1} parent=1 // pred_check
      _
    $region7: #{tpu_custom_call.1} parent=1 // pred_check_branch
      %38 = sbr.rel (0) target = $region9
    $region8: #{tpu_custom_call.1} parent=1 // pred_region
      %s40 = ssub.s32 128, 128
      %41 = vsyncadd [#allocation6], %s40
      %s43 = sshll.u32 [#allocation5], 4
      %s44 = int_to_ptr.vmem [resolvable:$true] %s43
      %46 = dma.hbm_to_vmem [thread:$0]  %s1, 128, %s44, [#allocation6]
    $region9: #{tpu_custom_call.1} parent=1 // pred_fallthru
      _
    // Predicated region
    $region10: #{tpu_custom_call.1} parent=1 // pred_check
      _
    $region11: #{tpu_custom_call.1} parent=1 // pred_check_branch
      %48 = sbr.rel (0) target = $region13
    $region12: #{tpu_custom_call.1} parent=1 // pred_region
      _
    $region13: #{tpu_custom_call.1} parent=1 // pred_fallthru
      _
    // Predicated region
    $region14: #{tpu_custom_call.1} parent=1 // pred_check
      _
    $region15: #{tpu_custom_call.1} parent=1 // pred_check_branch
      %50 = sbr.rel (0) target = $region17
    $region16: #{tpu_custom_call.1} parent=1 // pred_region
      %s52 = ssub.s32 16, 16
      %53 = vsyncadd [#allocation6], %s52
      %s55 = sshll.u32 [#allocation7], 4
      %s56 = int_to_ptr.vmem [resolvable:$true] %s55
      %58 = dma.hbm_to_vmem [thread:$0]  %s3, 16, %s56, [#allocation6]
    $region17: #{tpu_custom_call.1} parent=1 // pred_fallthru
      _
    // Predicated region
    $region18: #{tpu_custom_call.1} parent=1 // pred_check
      _
    $region19: #{tpu_custom_call.1} parent=1 // pred_check_branch
      %60 = sbr.rel (0) target = $region21
    $region20: #{tpu_custom_call.1} parent=1 // pred_region
      _
    $region21: #{tpu_custom_call.1} parent=1 // pred_fallthru
      _
    // Predicated region
    $region22: #{tpu_custom_call.1} parent=1 // pred_check
      _
    $region23: #{tpu_custom_call.1} parent=1 // pred_check_branch
      %62 = sbr.rel (0) target = $region25
    $region24: #{tpu_custom_call.1} parent=1 // pred_region
      %s64 = ssub.s32 512, 512
      %65 = vsyncadd [#allocation9], %s64
      %s66 = sshll.u32 [#allocation8], 4
      %s67 = int_to_ptr.vmem [resolvable:$true] %s66
      %72 = dma.hbm_to_vmem [thread:$0]  %s5, 512, %s67, [#allocation9], 128, 128, 8
    $region25: #{tpu_custom_call.1} parent=1 // pred_fallthru
      _
    // Predicated region
    $region26: #{tpu_custom_call.1} parent=1 // pred_check
      _
    $region27: #{tpu_custom_call.1} parent=1 // pred_check_branch
      %74 = sbr.rel (0) target = $region29
    $region28: #{tpu_custom_call.1} parent=1 // pred_region
      %s76 = ssub.s32 16, 16
      %77 = vsyncadd [#allocation9], %s76
      %s79 = sshll.u32 [#allocation10], 4
      %s80 = int_to_ptr.vmem [resolvable:$true] %s79
      %82 = dma.hbm_to_vmem [thread:$0]  %s6, 16, %s80, [#allocation9]
    $region29: #{tpu_custom_call.1} parent=1 // pred_fallthru
      _
    // Predicated region
    $region30: #{tpu_custom_call.1} parent=1 // pred_check
      _
    $region31: #{tpu_custom_call.1} parent=1 // pred_check_branch
      %84 = sbr.rel (0) target = $region33
    $region32: #{tpu_custom_call.1} parent=1 // pred_region
      _
    $region33: #{tpu_custom_call.1} parent=1 // pred_fallthru
      _
    // Predicated region
    $region34: #{tpu_custom_call.1} parent=1 // pred_check
      _
    $region35: #{tpu_custom_call.1} parent=1 // pred_check_branch
      %86 = sbr.rel (0) target = $region37
    $region36: #{tpu_custom_call.1} parent=1 // pred_region
      _
    $region37: #{tpu_custom_call.1} parent=1 // pred_fallthru
      _
    // Predicated region
    $region38: #{tpu_custom_call.1} parent=1 // pred_check
      _
    $region39: #{tpu_custom_call.1} parent=1 // pred_check_branch
      %88 = sbr.rel (0) target = $region41
    $region40: #{tpu_custom_call.1} parent=1 // pred_region
      %s90 = ssub.s32 512, 512
      %91 = vsyncadd [#allocation12], %s90
      %s92 = sshll.u32 [#allocation11], 4
      %s93 = int_to_ptr.vmem [resolvable:$true] %s92
      %98 = dma.hbm_to_vmem [thread:$0]  %s9, 512, %s93, [#allocation12], 128, 128, 8
    $region41: #{tpu_custom_call.1} parent=1 // pred_fallthru
      _
    // Predicated region
    $region42: #{tpu_custom_call.1} parent=1 // pred_check
      _
    $region43: #{tpu_custom_call.1} parent=1 // pred_check_branch
      %100 = sbr.rel (0) target = $region45
    $region44: #{tpu_custom_call.1} parent=1 // pred_region
      _
    $region45: #{tpu_custom_call.1} parent=1 // pred_fallthru
      _
    // Predicated region
    $region46: #{tpu_custom_call.1} parent=1 // pred_check
      _
    $region47: #{tpu_custom_call.1} parent=1 // pred_check_branch
      %102 = sbr.rel (0) target = $region49
    $region48: #{tpu_custom_call.1} parent=1 // pred_region
      _
    $region49: #{tpu_custom_call.1} parent=1 // pred_fallthru
      _
    // Predicated region
    $region50: #{tpu_custom_call.1} parent=1 // pred_check
      _
    $region51: #{tpu_custom_call.1} parent=1 // pred_check_branch
      %104 = sbr.rel (0) target = $region53
    $region52: #{tpu_custom_call.1} parent=1 // pred_region
      _
    $region53: #{tpu_custom_call.1} parent=1 // pred_fallthru
      _
    // Predicated region
    $region54: #{tpu_custom_call.1} parent=1 // pred_check
      _
    $region55: #{tpu_custom_call.1} parent=1 // pred_check_branch
      %106 = sbr.rel (0) target = $region57
    $region56: #{tpu_custom_call.1} parent=1 // pred_region
      _
    $region57: #{tpu_custom_call.1} parent=1 // pred_fallthru
      _
    // Predicated region
    $region58: #{tpu_custom_call.1} parent=1 // pred_check
      _
    $region59: #{tpu_custom_call.1} parent=1 // pred_check_branch
      %108 = sbr.rel (0) target = $region61
    $region60: #{tpu_custom_call.1} parent=1 // pred_region
      %109 = dma.done [#allocation4], 256
    $region61: #{tpu_custom_call.1} parent=1 // pred_fallthru
      _
    // Predicated region
    $region62: #{tpu_custom_call.1} parent=1 // pred_check
      _
    $region63: #{tpu_custom_call.1} parent=1 // pred_check_branch
      %111 = sbr.rel (0) target = $region65
    $region64: #{tpu_custom_call.1} parent=1 // pred_region
      %112 = dma.done [#allocation6], 128
    $region65: #{tpu_custom_call.1} parent=1 // pred_fallthru
      _
    // Predicated region
    $region66: #{tpu_custom_call.1} parent=1 // pred_check
      _
    $region67: #{tpu_custom_call.1} parent=1 // pred_check_branch
      %114 = sbr.rel (0) target = $region69
    $region68: #{tpu_custom_call.1} parent=1 // pred_region
      %115 = dma.done [#allocation6], 16
    $region69: #{tpu_custom_call.1} parent=1 // pred_fallthru
      _
    // Predicated region
    $region70: #{tpu_custom_call.1} parent=1 // pred_check
      _
    $region71: #{tpu_custom_call.1} parent=1 // pred_check_branch
      %117 = sbr.rel (0) target = $region73
    $region72: #{tpu_custom_call.1} parent=1 // pred_region
      %118 = dma.done [#allocation9], 512
    $region73: #{tpu_custom_call.1} parent=1 // pred_fallthru
      _
    // Predicated region
    $region74: #{tpu_custom_call.1} parent=1 // pred_check
      _
    $region75: #{tpu_custom_call.1} parent=1 // pred_check_branch
      %120 = sbr.rel (0) target = $region77
    $region76: #{tpu_custom_call.1} parent=1 // pred_region
      %121 = dma.done [#allocation9], 16
    $region77: #{tpu_custom_call.1} parent=1 // pred_fallthru
      _
    // Predicated region
    $region78: #{tpu_custom_call.1} parent=1 // pred_check
      _
    $region79: #{tpu_custom_call.1} parent=1 // pred_check_branch
      %123 = sbr.rel (0) target = $region81
    $region80: #{tpu_custom_call.1} parent=1 // pred_region
      %124 = dma.done [#allocation12], 512
    $region81: #{tpu_custom_call.1} parent=1 // pred_fallthru
      _
    %v125 = vld [vmem:[#allocation3] sm:$0xff]
    %v126 = vld [vmem:[#allocation3 + $0x8] sm:$0xff]
    %v127 = vld [vmem:[#allocation5] sm:$0x3f]
    %v128 = vld [vmem:[#allocation8] sm:$0xff]
    %v129 = vld [vmem:[#allocation8 + $0x8] sm:$0xff]
    %v130 = vld [vmem:[#allocation8 + $0x10] sm:$0xff]
    %v131 = vld [vmem:[#allocation8 + $0x18] sm:$0xff]
    %v132 = vld [vmem:[#allocation10] sm:$0x1]
    %v134 = vlaneseq
    %v135 = vshrl.u32 %v134, 7
    %v136 = vsub.s32 0, %v135
    %v137 = vrot.slane %v132, %v136
    %vm139 = vcmask 261120
    %v141 = vsel %vm139, %v125, 0
    %v144 = vsel %vm139, %v126, 0
    %146 = vmatprep.subr.mxu0 0.0
    %147 = vmatpush1.msra.mxu0 0.0
    %148 = vmatprep.subr.mxu0 0.0
    %149 = vmatpush1.msra.mxu0 0.0
    %150 = vmatprep.subr.mxu0 0.0
    %151 = vmatpush1.msra.mxu0 0.0
    %152 = vmatprep.subr.mxu0 0.0
    %153 = vmatpush1.msra.mxu0 0.0
    %154 = vmatprep.subr.mxu0 0.0
    %155 = vmatpush1.msra.mxu0 0.0
    %156 = vmatprep.subr.mxu0 0.0
    %157 = vmatpush1.msra.mxu0 0.0
    %158 = vmatprep.subr.mxu0 0.0
    %159 = vmatpush1.msra.mxu0 0.0
    %160 = vmatprep.subr.mxu0 0.0
    %161 = vmatpush1.msra.mxu0 0.0
    %162 = vmatprep.subr.mxu0 0.0
    %163 = vmatpush1.msra.mxu0 0.0
    %164 = vmatprep.subr.mxu0 0.0
    %165 = vmatpush1.msra.mxu0 0.0
    %166 = vmatprep.subr.mxu0 0.0
    %167 = vmatpush1.msra.mxu0 0.0
    %168 = vmatprep.subr.mxu0 0.0
    %169 = vmatpush1.msra.mxu0 0.0
    %170 = vmatprep.subr.mxu0 0.0
    %171 = vmatpush1.msra.mxu0 %v131
    %172 = vmatprep.subr.mxu0 0.0
    %173 = vmatpush1.msra.mxu0 %v130
    %174 = vmatprep.subr.mxu0 0.0
    %175 = vmatpush1.msra.mxu0 %v129
    %176 = vmatprep.subr.mxu0 0.0
    %177 = vmatpush1.msra.mxu0 %v128
    %178 = vmatprep.subr.mxu0 0.0
    %179 = vmatpush2.msra.mxu0 0.0
    %180 = vmatprep.subr.mxu0 0.0
    %181 = vmatpush2.msra.mxu0 0.0
    %182 = vmatprep.subr.mxu0 0.0
    %183 = vmatpush2.msra.mxu0 0.0
    %184 = vmatprep.subr.mxu0 0.0
    %185 = vmatpush2.msra.mxu0 0.0
    %186 = vmatprep.subr.mxu0 0.0
    %187 = vmatpush2.msra.mxu0 0.0
    %188 = vmatprep.subr.mxu0 0.0
    %189 = vmatpush2.msra.mxu0 0.0
    %190 = vmatprep.subr.mxu0 0.0
    %191 = vmatpush2.msra.mxu0 0.0
    %192 = vmatprep.subr.mxu0 0.0
    %193 = vmatpush2.msra.mxu0 0.0
    %194 = vmatprep.subr.mxu0 0.0
    %195 = vmatpush2.msra.mxu0 0.0
    %196 = vmatprep.subr.mxu0 0.0
    %197 = vmatpush2.msra.mxu0 0.0
    %198 = vmatprep.subr.mxu0 0.0
    %199 = vmatpush2.msra.mxu0 0.0
    %200 = vmatprep.subr.mxu0 0.0
    %201 = vmatpush2.msra.mxu0 0.0
    %202 = vmatprep.subr.mxu0 0.0
    %203 = vmatpush2.msra.mxu0 0.0
    %204 = vmatprep.subr.mxu0 0.0
    %205 = vmatpush2.msra.mxu0 0.0
    %206 = vmatprep.subr.mxu0 0.0
    %207 = vmatpush2.msra.mxu0 0.0
    %208 = vmatprep.subr.mxu0 0.0
    %209 = vmatpush2.msra.mxu0 0.0
    %210 = vmatprep.mubr.f32.mxu0 0.0
    %211 = vmatmul.mubr.f32.gmra.mxu0 %v141
    %v212 = vpop.f32.mrf.mxu0
    %v213 = vadd.f32 %v137, %v212
    %v214 = vpop.f32.mrf.mxu0
    %215 = vmatprep.mubr.f32.mxu0 0.0
    %216 = vmatmul.mubr.f32.gmra.mxu0 %v144
    %v217 = vpop.f32.mrf.mxu0
    %v218 = vadd.f32 %v137, %v217
    %v219 = vpop.f32.mrf.mxu0
    %220 = vdwg.mxu0
    %v222 = vsel %vm139, %v127, 0
    %v225 = vsel %vm139, %v213, 0
    %v228 = vsel %vm139, %v218, 0
    %230 = vmatprep.subr.mxu0 0.0
    %231 = vmatpush1.xpose.msra.mxu0 0.0
    %232 = vmatprep.subr.mxu0 0.0
    %233 = vmatpush1.xpose.msra.mxu0 0.0
    %234 = vmatprep.subr.mxu0 0.0
    %235 = vmatpush1.xpose.msra.mxu0 0.0
    %236 = vmatprep.subr.mxu0 0.0
    %237 = vmatpush1.xpose.msra.mxu0 0.0
    %238 = vmatprep.subr.mxu0 0.0
    %239 = vmatpush1.xpose.msra.mxu0 0.0
    %240 = vmatprep.subr.mxu0 0.0
    %241 = vmatpush1.xpose.msra.mxu0 0.0
    %242 = vmatprep.subr.mxu0 0.0
    %243 = vmatpush1.xpose.msra.mxu0 0.0
    %244 = vmatprep.subr.mxu0 0.0
    %245 = vmatpush1.xpose.msra.mxu0 0.0
    %246 = vmatprep.subr.mxu0 0.0
    %247 = vmatpush1.xpose.msra.mxu0 0.0
    %248 = vmatprep.subr.mxu0 0.0
    %249 = vmatpush1.xpose.msra.mxu0 0.0
    %250 = vmatprep.subr.mxu0 0.0
    %251 = vmatpush1.xpose.msra.mxu0 0.0
    %252 = vmatprep.subr.mxu0 0.0
    %253 = vmatpush1.xpose.msra.mxu0 0.0
    %254 = vmatprep.subr.mxu0 0.0
    %255 = vmatpush1.xpose.msra.mxu0 0.0
    %256 = vmatprep.subr.mxu0 0.0
    %257 = vmatpush1.xpose.msra.mxu0 0.0
    %258 = vmatprep.subr.mxu0 0.0
    %259 = vmatpush1.xpose.msra.mxu0 %v228
    %260 = vmatprep.subr.mxu0 0.0
    %261 = vmatpush1.xpose.msra.mxu0 %v225
    %262 = vmatprep.subr.mxu0 0.0
    %263 = vmatpush2.xpose.msra.mxu0 0.0
    %264 = vmatprep.subr.mxu0 0.0
    %265 = vmatpush2.xpose.msra.mxu0 0.0
    %266 = vmatprep.subr.mxu0 0.0
    %267 = vmatpush2.xpose.msra.mxu0 0.0
    %268 = vmatprep.subr.mxu0 0.0
    %269 = vmatpush2.xpose.msra.mxu0 0.0
    %270 = vmatprep.subr.mxu0 0.0
    %271 = vmatpush2.xpose.msra.mxu0 0.0
    %272 = vmatprep.subr.mxu0 0.0
    %273 = vmatpush2.xpose.msra.mxu0 0.0
    %274 = vmatprep.subr.mxu0 0.0
    %275 = vmatpush2.xpose.msra.mxu0 0.0
    %276 = vmatprep.subr.mxu0 0.0
    %277 = vmatpush2.xpose.msra.mxu0 0.0
    %278 = vmatprep.subr.mxu0 0.0
    %279 = vmatpush2.xpose.msra.mxu0 0.0
    %280 = vmatprep.subr.mxu0 0.0
    %281 = vmatpush2.xpose.msra.mxu0 0.0
    %282 = vmatprep.subr.mxu0 0.0
    %283 = vmatpush2.xpose.msra.mxu0 0.0
    %284 = vmatprep.subr.mxu0 0.0
    %285 = vmatpush2.xpose.msra.mxu0 0.0
    %286 = vmatprep.subr.mxu0 0.0
    %287 = vmatpush2.xpose.msra.mxu0 0.0
    %288 = vmatprep.subr.mxu0 0.0
    %289 = vmatpush2.xpose.msra.mxu0 0.0
    %290 = vmatprep.subr.mxu0 0.0
    %291 = vmatpush2.xpose.msra.mxu0 0.0
    %292 = vmatprep.subr.mxu0 0.0
    %293 = vmatpush2.xpose.msra.mxu0 0.0
    %294 = vmatprep.mubr.f32.mxu0 0.0
    %295 = vmatmul.mubr.f32.gmra.mxu0 %v222
    %v296 = vpop.f32.mrf.mxu0
    %v297 = vadd.f32 0.0, %v296
    %v298 = vpop.f32.mrf.mxu0
    %299 = vdwg.mxu0
    %v300 = vld [vmem:[%s2] sm:$0x3f]
    %v301 = vld [vmem:[#allocation7] sm:$0x1]
    %303 = vset.pattern.permute.xlu0 0
    %304 = vperm.xlu0 %303, %v300
    %v305 = vpop.permute.xlu0 %304
    %v308 = vlaneseq
    %v309 = vshrl.u32 %v308, 7
    %v310 = vsub.s32 0, %v309
    %v311 = vrot.slane %v301, %v310
    %vm313 = vcmp.eq.f32.partialorder %v305, %v311
    %v314 = vsel %vm313, %v297, -1e+10
    %vm315 = vcmask 128000
    %v316 = vsel %vm315, %v314, -inf
    %317 = vmax.xlane.f32.xlu0 %v316
    %v318 = vpop.xlane.xlu0 %317
    %v319 = vsub.f32 %v314, %v318
    %v320 = vmul.f32 %v319, 1.442695
    %v321 = vpow.pop %v320
    %v322 = vsel %vm315, %v321, 0.0
    %323 = vadd.xlane.f32.xlu0 %v322
    %v324 = vpop.xlane.xlu0 %323
    %v325 = vrcp.pop %v324
    %v326 = vmul.f32 %v321, %v325
    %vm327 = vcmask 130048
    %v329 = vsel %vm327, %v326, 0
    %331 = vmatprep.subr.mxu0 0.0
    %332 = vmatpush1.msra.mxu0 0.0
    %333 = vmatprep.subr.mxu0 0.0
    %334 = vmatpush1.msra.mxu0 0.0
    %335 = vmatprep.subr.mxu0 0.0
    %336 = vmatpush1.msra.mxu0 0.0
    %337 = vmatprep.subr.mxu0 0.0
    %338 = vmatpush1.msra.mxu0 0.0
    %339 = vmatprep.subr.mxu0 0.0
    %340 = vmatpush1.msra.mxu0 0.0
    %341 = vmatprep.subr.mxu0 0.0
    %342 = vmatpush1.msra.mxu0 0.0
    %343 = vmatprep.subr.mxu0 0.0
    %344 = vmatpush1.msra.mxu0 0.0
    %345 = vmatprep.subr.mxu0 0.0
    %346 = vmatpush1.msra.mxu0 0.0
    %347 = vmatprep.subr.mxu0 0.0
    %348 = vmatpush1.msra.mxu0 0.0
    %349 = vmatprep.subr.mxu0 0.0
    %350 = vmatpush1.msra.mxu0 0.0
    %351 = vmatprep.subr.mxu0 0.0
    %352 = vmatpush1.msra.mxu0 0.0
    %353 = vmatprep.subr.mxu0 0.0
    %354 = vmatpush1.msra.mxu0 0.0
    %355 = vmatprep.subr.mxu0 0.0
    %356 = vmatpush1.msra.mxu0 0.0
    %357 = vmatprep.subr.mxu0 0.0
    %358 = vmatpush1.msra.mxu0 0.0
    %359 = vmatprep.subr.mxu0 0.0
    %360 = vmatpush1.msra.mxu0 %v126
    %361 = vmatprep.subr.mxu0 0.0
    %362 = vmatpush1.msra.mxu0 %v125
    %363 = vmatprep.subr.mxu0 0.0
    %364 = vmatpush2.msra.mxu0 0.0
    %365 = vmatprep.subr.mxu0 0.0
    %366 = vmatpush2.msra.mxu0 0.0
    %367 = vmatprep.subr.mxu0 0.0
    %368 = vmatpush2.msra.mxu0 0.0
    %369 = vmatprep.subr.mxu0 0.0
    %370 = vmatpush2.msra.mxu0 0.0
    %371 = vmatprep.subr.mxu0 0.0
    %372 = vmatpush2.msra.mxu0 0.0
    %373 = vmatprep.subr.mxu0 0.0
    %374 = vmatpush2.msra.mxu0 0.0
    %375 = vmatprep.subr.mxu0 0.0
    %376 = vmatpush2.msra.mxu0 0.0
    %377 = vmatprep.subr.mxu0 0.0
    %378 = vmatpush2.msra.mxu0 0.0
    %379 = vmatprep.subr.mxu0 0.0
    %380 = vmatpush2.msra.mxu0 0.0
    %381 = vmatprep.subr.mxu0 0.0
    %382 = vmatpush2.msra.mxu0 0.0
    %383 = vmatprep.subr.mxu0 0.0
    %384 = vmatpush2.msra.mxu0 0.0
    %385 = vmatprep.subr.mxu0 0.0
    %386 = vmatpush2.msra.mxu0 0.0
    %387 = vmatprep.subr.mxu0 0.0
    %388 = vmatpush2.msra.mxu0 0.0
    %389 = vmatprep.subr.mxu0 0.0
    %390 = vmatpush2.msra.mxu0 0.0
    %391 = vmatprep.subr.mxu0 0.0
    %392 = vmatpush2.msra.mxu0 0.0
    %393 = vmatprep.subr.mxu0 0.0
    %394 = vmatpush2.msra.mxu0 0.0
    %395 = vmatprep.mubr.f32.mxu0 0.0
    %396 = vmatmul.mubr.f32.gmra.mxu0 %v329
    %v397 = vpop.f32.mrf.mxu0
    %v398 = vadd.f32 0.0, %v397
    %v399 = vpop.f32.mrf.mxu0
    %400 = vdwg.mxu0
    %v401 = vld [vmem:[%s7] sm:$0xff]
    %v402 = vld [vmem:[%s7 + $0x8] sm:$0xff]
    %v403 = vld [vmem:[%s7 + $0x10] sm:$0xff]
    %v404 = vld [vmem:[%s7 + $0x18] sm:$0xff]
    %v405 = vld [vmem:[%s8] sm:$0x1]
    %v407 = vlaneseq
    %v408 = vshrl.u32 %v407, 7
    %v409 = vsub.s32 0, %v408
    %v410 = vrot.slane %v405, %v409
    %v413 = vsel %vm139, %v398, 0
    %415 = vmatprep.subr.mxu0 0.0
    %416 = vmatpush1.msra.mxu0 0.0
    %417 = vmatprep.subr.mxu0 0.0
    %418 = vmatpush1.msra.mxu0 0.0
    %419 = vmatprep.subr.mxu0 0.0
    %420 = vmatpush1.msra.mxu0 0.0
    %421 = vmatprep.subr.mxu0 0.0
    %422 = vmatpush1.msra.mxu0 0.0
    %423 = vmatprep.subr.mxu0 0.0
    %424 = vmatpush1.msra.mxu0 0.0
    %425 = vmatprep.subr.mxu0 0.0
    %426 = vmatpush1.msra.mxu0 0.0
    %427 = vmatprep.subr.mxu0 0.0
    %428 = vmatpush1.msra.mxu0 0.0
    %429 = vmatprep.subr.mxu0 0.0
    %430 = vmatpush1.msra.mxu0 0.0
    %431 = vmatprep.subr.mxu0 0.0
    %432 = vmatpush1.msra.mxu0 0.0
    %433 = vmatprep.subr.mxu0 0.0
    %434 = vmatpush1.msra.mxu0 0.0
    %435 = vmatprep.subr.mxu0 0.0
    %436 = vmatpush1.msra.mxu0 0.0
    %437 = vmatprep.subr.mxu0 0.0
    %438 = vmatpush1.msra.mxu0 0.0
    %439 = vmatprep.subr.mxu0 0.0
    %440 = vmatpush1.msra.mxu0 %v404
    %441 = vmatprep.subr.mxu0 0.0
    %442 = vmatpush1.msra.mxu0 %v403
    %443 = vmatprep.subr.mxu0 0.0
    %444 = vmatpush1.msra.mxu0 %v402
    %445 = vmatprep.subr.mxu0 0.0
    %446 = vmatpush1.msra.mxu0 %v401
    %447 = vmatprep.subr.mxu0 0.0
    %448 = vmatpush2.msra.mxu0 0.0
    %449 = vmatprep.subr.mxu0 0.0
    %450 = vmatpush2.msra.mxu0 0.0
    %451 = vmatprep.subr.mxu0 0.0
    %452 = vmatpush2.msra.mxu0 0.0
    %453 = vmatprep.subr.mxu0 0.0
    %454 = vmatpush2.msra.mxu0 0.0
    %455 = vmatprep.subr.mxu0 0.0
    %456 = vmatpush2.msra.mxu0 0.0
    %457 = vmatprep.subr.mxu0 0.0
    %458 = vmatpush2.msra.mxu0 0.0
    %459 = vmatprep.subr.mxu0 0.0
    %460 = vmatpush2.msra.mxu0 0.0
    %461 = vmatprep.subr.mxu0 0.0
    %462 = vmatpush2.msra.mxu0 0.0
    %463 = vmatprep.subr.mxu0 0.0
    %464 = vmatpush2.msra.mxu0 0.0
    %465 = vmatprep.subr.mxu0 0.0
    %466 = vmatpush2.msra.mxu0 0.0
    %467 = vmatprep.subr.mxu0 0.0
    %468 = vmatpush2.msra.mxu0 0.0
    %469 = vmatprep.subr.mxu0 0.0
    %470 = vmatpush2.msra.mxu0 0.0
    %471 = vmatprep.subr.mxu0 0.0
    %472 = vmatpush2.msra.mxu0 0.0
    %473 = vmatprep.subr.mxu0 0.0
    %474 = vmatpush2.msra.mxu0 0.0
    %475 = vmatprep.subr.mxu0 0.0
    %476 = vmatpush2.msra.mxu0 0.0
    %477 = vmatprep.subr.mxu0 0.0
    %478 = vmatpush2.msra.mxu0 0.0
    %479 = vmatprep.mubr.f32.mxu0 0.0
    %480 = vmatmul.mubr.f32.gmra.mxu0 %v413
    %v481 = vpop.f32.mrf.mxu0
    %v482 = vadd.f32 %v410, %v481
    %v483 = vpop.f32.mrf.mxu0
    %484 = vdwg.mxu0
    %v485 = vld [vmem:[#allocation11] sm:$0xff]
    %v486 = vld [vmem:[#allocation11 + $0x8] sm:$0xff]
    %v487 = vld [vmem:[#allocation11 + $0x10] sm:$0xff]
    %v488 = vld [vmem:[#allocation11 + $0x18] sm:$0xff]
    %v489 = vld [vmem:[%s10] sm:$0x1]
    %v491 = vlaneseq
    %v492 = vshrl.u32 %v491, 7
    %v493 = vsub.s32 0, %v492
    %v494 = vrot.slane %v489, %v493
    %496 = vmatprep.subr.mxu0 0.0
    %497 = vmatpush1.msra.mxu0 0.0
    %498 = vmatprep.subr.mxu0 0.0
    %499 = vmatpush1.msra.mxu0 0.0
    %500 = vmatprep.subr.mxu0 0.0
    %501 = vmatpush1.msra.mxu0 0.0
    %502 = vmatprep.subr.mxu0 0.0
    %503 = vmatpush1.msra.mxu0 0.0
    %504 = vmatprep.subr.mxu0 0.0
    %505 = vmatpush1.msra.mxu0 0.0
    %506 = vmatprep.subr.mxu0 0.0
    %507 = vmatpush1.msra.mxu0 0.0
    %508 = vmatprep.subr.mxu0 0.0
    %509 = vmatpush1.msra.mxu0 0.0
    %510 = vmatprep.subr.mxu0 0.0
    %511 = vmatpush1.msra.mxu0 0.0
    %512 = vmatprep.subr.mxu0 0.0
    %513 = vmatpush1.msra.mxu0 0.0
    %514 = vmatprep.subr.mxu0 0.0
    %515 = vmatpush1.msra.mxu0 0.0
    %516 = vmatprep.subr.mxu0 0.0
    %517 = vmatpush1.msra.mxu0 0.0
    %518 = vmatprep.subr.mxu0 0.0
    %519 = vmatpush1.msra.mxu0 0.0
    %520 = vmatprep.subr.mxu0 0.0
    %521 = vmatpush1.msra.mxu0 %v488
    %522 = vmatprep.subr.mxu0 0.0
    %523 = vmatpush1.msra.mxu0 %v487
    %524 = vmatprep.subr.mxu0 0.0
    %525 = vmatpush1.msra.mxu0 %v486
    %526 = vmatprep.subr.mxu0 0.0
    %527 = vmatpush1.msra.mxu0 %v485
    %528 = vmatprep.subr.mxu0 0.0
    %529 = vmatpush2.msra.mxu0 0.0
    %530 = vmatprep.subr.mxu0 0.0
    %531 = vmatpush2.msra.mxu0 0.0
    %532 = vmatprep.subr.mxu0 0.0
    %533 = vmatpush2.msra.mxu0 0.0
    %534 = vmatprep.subr.mxu0 0.0
    %535 = vmatpush2.msra.mxu0 0.0
    %536 = vmatprep.subr.mxu0 0.0
    %537 = vmatpush2.msra.mxu0 0.0
    %538 = vmatprep.subr.mxu0 0.0
    %539 = vmatpush2.msra.mxu0 0.0
    %540 = vmatprep.subr.mxu0 0.0
    %541 = vmatpush2.msra.mxu0 0.0
    %542 = vmatprep.subr.mxu0 0.0
    %543 = vmatpush2.msra.mxu0 0.0
    %544 = vmatprep.subr.mxu0 0.0
    %545 = vmatpush2.msra.mxu0 0.0
    %546 = vmatprep.subr.mxu0 0.0
    %547 = vmatpush2.msra.mxu0 0.0
    %548 = vmatprep.subr.mxu0 0.0
    %549 = vmatpush2.msra.mxu0 0.0
    %550 = vmatprep.subr.mxu0 0.0
    %551 = vmatpush2.msra.mxu0 0.0
    %552 = vmatprep.subr.mxu0 0.0
    %553 = vmatpush2.msra.mxu0 0.0
    %554 = vmatprep.subr.mxu0 0.0
    %555 = vmatpush2.msra.mxu0 0.0
    %556 = vmatprep.subr.mxu0 0.0
    %557 = vmatpush2.msra.mxu0 0.0
    %558 = vmatprep.subr.mxu0 0.0
    %559 = vmatpush2.msra.mxu0 0.0
    %560 = vmatprep.mubr.f32.mxu0 0.0
    %561 = vmatmul.mubr.f32.gmra.mxu0 %v222
    %v562 = vpop.f32.mrf.mxu0
    %v563 = vadd.f32 %v494, %v562
    %v564 = vpop.f32.mrf.mxu0
    %565 = vdwg.mxu0
    %v566 = vtanh.pop %v482
    %v567 = vld [vmem:[%s11] sm:$0x1]
    %v569 = vlaneseq
    %v570 = vshrl.u32 %v569, 7
    %v571 = vsub.s32 0, %v570
    %v572 = vrot.slane %v567, %v571
    %v574 = vmul.f32 %v566, %v572
    %vm575 = vcmask 259072
    %v576 = vsel %vm575, %v574, 0.0
    %577 = vadd.xlane.f32.xlu0 %v576
    %v578 = vpop.xlane.xlu0 %577
    %v579 = vtanh.pop %v563
    %v580 = vld [vmem:[%s12] sm:$0x1]
    %v582 = vlaneseq
    %v583 = vshrl.u32 %v582, 7
    %v584 = vsub.s32 0, %v583
    %v585 = vrot.slane %v580, %v584
    %v587 = vmul.f32 %v579, %v585
    %v588 = vsel %vm575, %v587, 0.0
    %589 = vadd.xlane.f32.xlu0 %v588
    %v590 = vpop.xlane.xlu0 %589
    %v591 = vadd.f32 %v578, %v590
    %v592 = vld [vmem:[#allocation2] sm:$0x1]
    %v594 = vlaneseq
    %v595 = vshrl.u32 %v594, 7
    %v596 = vsub.s32 0, %v595
    %v597 = vrot.slane %v592, %v596
    %v599 = vadd.f32 %v591, %v597
    %v600 = vld [vmem:[%s4] sm:$0x3f]
    %vm601 = vcmp.gt.f32.partialorder %v600, 0.0
    %v602 = vsel %vm601, %v599, -1e+10
    %vm603 = vcmask 5120
    %604 = vst.msk [vmem:[%s14] sm:$0x3f] %vm603, %v602
    // Predicated region
    $region82: #{tpu_custom_call.1} parent=1 // pred_check
      _
    $region83: #{tpu_custom_call.1} parent=1 // pred_check_branch
      %606 = sbr.rel (0) target = $region85
    $region84: #{tpu_custom_call.1} parent=1 // pred_region
      _
    $region85: #{tpu_custom_call.1} parent=1 // pred_fallthru
      _
    // Predicated region
    $region86: #{tpu_custom_call.1} parent=1 // pred_check
      _
    $region87: #{tpu_custom_call.1} parent=1 // pred_check_branch
      %608 = sbr.rel (0) target = $region89
    $region88: #{tpu_custom_call.1} parent=1 // pred_region
      _
    $region89: #{tpu_custom_call.1} parent=1 // pred_fallthru
      _
    %609 = vsyncpa [#allocation4], 1
    %610 = vsyncpa [#allocation6], 1
    %611 = vsyncpa [#allocation9], 1
    %612 = vsyncpa [#allocation12], 1

</llo_original>
